<compile_context>
chip_gen: v7x
topology: tpu7x:2x2x1
jax: 0.10.0
libtpu: 0.0.40
codegen_flags: <defaults>
</compile_context>

<pallas_src>
import jax
import jax.numpy as jnp
from jax.experimental import pallas as pl
from jax.experimental.pallas import tpu as pltpu

BN_EPS = 1e-5
LANES = 128                 # feature padding target (one vreg lane width)
MXU_DTYPE = jnp.bfloat16    # matmul-input dtype; accumulation stays f32


# ------------------------------ fused kernel -------------------------------- #

def _mm(x_f32, w_ref):
    """bf16 MXU matmul with f32 accumulation. Weights are stored bf16."""
    return jnp.dot(x_f32.astype(MXU_DTYPE), w_ref[...],
                   preferred_element_type=jnp.float32)


def _bn_relu(h, gamma, beta):
    """BatchNorm1d (training-mode batch stats, biased var) + ReLU, in f32."""
    mean = jnp.mean(h, axis=0, keepdims=True)
    var = jnp.mean((h - mean) ** 2, axis=0, keepdims=True)
    hhat = (h - mean) * jax.lax.rsqrt(var + BN_EPS)
    return jnp.maximum(hhat * gamma + beta, 0.0)


def _make_hand_vae_kernel(n_enc, n_dec):
    """Fused kernel for a given number of encoder/decoder hidden blocks.

    Ref order:  x,
                [W,b,gamma,beta] * n_enc,
                W_mulogvar, b_mulogvar,
                eps,
                [W,b,gamma,beta] * n_dec,
                W_out, b_out,
                -> out  (B, 4*LANES) = [mu | logvar | z | x_recon]
    """
    def kernel(*refs):
        it = iter(refs)
        x_ref = next(it)
        enc = [tuple(next(it) for _ in range(4)) for _ in range(n_enc)]
        wml_ref = next(it)
        bml_ref = next(it)
        eps_ref = next(it)
        dec = [tuple(next(it) for _ in range(4)) for _ in range(n_dec)]
        wout_ref = next(it)
        bout_ref = next(it)
        out_ref = next(it)

        # ---- encoder hidden blocks: Linear -> BatchNorm1d -> ReLU
        h = x_ref[...]
        for (w_ref, b_ref, g_ref, be_ref) in enc:
            pre = _mm(h, w_ref) + b_ref[...]
            h = _bn_relu(pre, g_ref[...], be_ref[...])

        # ---- fused mu / logvar projection: one (128, 256) matmul,
        #      split at the 128-lane (vreg) boundary.
        ml = _mm(h, wml_ref) + bml_ref[...]          # (B, 2*LANES)
        mu = ml[:, :LANES]
        logvar = ml[:, LANES:]

        # ---- reparameterization: z = mu + exp(0.5 * logvar) * eps
        z = mu + jnp.exp(0.5 * logvar) * eps_ref[...]

        # ---- decoder hidden blocks: Linear -> BatchNorm1d -> ReLU
        d = z
        for (w_ref, b_ref, g_ref, be_ref) in dec:
            pre = _mm(d, w_ref) + b_ref[...]
            d = _bn_relu(pre, g_ref[...], be_ref[...])

        # ---- output Linear + Tanh
        xrec = jnp.tanh(_mm(d, wout_ref) + bout_ref[...])

        # ---- single lane-dense 512-wide output slab (all slice boundaries
        #      are 128-aligned -> whole-vreg unmasked stores).
        out_ref[:, 0:2 * LANES] = ml                       # [mu | logvar]
        out_ref[:, 2 * LANES:3 * LANES] = z
        out_ref[:, 3 * LANES:4 * LANES] = xrec

    return kernel


# ----------------------------- parameter setup ------------------------------ #

def _init_linear(key, d_in, d_out):
    kw, kb = jax.random.split(key)
    bound = 1.0 / jnp.sqrt(jnp.float32(d_in))
    w = jax.random.uniform(kw, (d_in, d_out), jnp.float32, -bound, bound)
    b = jax.random.uniform(kb, (1, d_out), jnp.float32, -bound, bound)
    return w, b


def _pad_weight(w, rows=LANES, cols=LANES):
    return jnp.pad(w, ((0, rows - w.shape[0]), (0, cols - w.shape[1]))).astype(MXU_DTYPE)


def _pad_row(v, cols=LANES):
    return jnp.pad(v, ((0, 0), (0, cols - v.shape[1]))).astype(jnp.float32)


def init_hand_vae_params(key, encoder_dims, decoder_dims):
    assert encoder_dims[-1] == decoder_dims[0], "latent dim must match"
    assert max(max(encoder_dims), max(decoder_dims)) <= LANES
    latent = encoder_dims[-1]
    params = {"enc_blocks": [], "dec_blocks": [],
              "meta": {"in_dim": encoder_dims[0],
                       "latent_dim": latent,
                       "out_dim": decoder_dims[-1]}}

    # Encoder hidden blocks: Linear + BatchNorm1d + ReLU
    for i in range(len(encoder_dims) - 2):
        key, sub = jax.random.split(key)
        w, b = _init_linear(sub, encoder_dims[i], encoder_dims[i + 1])
        gamma = jnp.ones((1, encoder_dims[i + 1]), jnp.float32)   # padded cols -> 0
        beta = jnp.zeros((1, encoder_dims[i + 1]), jnp.float32)
        params["enc_blocks"].append(
            (_pad_weight(w), _pad_row(b), _pad_row(gamma), _pad_row(beta)))

    # Merged mu / logvar projection: cols [0:latent] = mu, [LANES:LANES+latent] = logvar
    key, k_mu, k_lv = jax.random.split(key, 3)
    w_mu, b_mu = _init_linear(k_mu, encoder_dims[-2], latent)
    w_lv, b_lv = _init_linear(k_lv, encoder_dims[-2], latent)
    w_ml = jnp.zeros((LANES, 2 * LANES), jnp.float32)
    w_ml = w_ml.at[:encoder_dims[-2], :latent].set(w_mu)
    w_ml = w_ml.at[:encoder_dims[-2], LANES:LANES + latent].set(w_lv)
    b_ml = jnp.zeros((1, 2 * LANES), jnp.float32)
    b_ml = b_ml.at[:, :latent].set(b_mu)
    b_ml = b_ml.at[:, LANES:LANES + latent].set(b_lv)
    params["w_ml"] = w_ml.astype(MXU_DTYPE)
    params["b_ml"] = b_ml

    # Decoder hidden blocks: Linear + BatchNorm1d + ReLU
    for i in range(len(decoder_dims) - 2):
        key, sub = jax.random.split(key)
        w, b = _init_linear(sub, decoder_dims[i], decoder_dims[i + 1])
        gamma = jnp.ones((1, decoder_dims[i + 1]), jnp.float32)
        beta = jnp.zeros((1, decoder_dims[i + 1]), jnp.float32)
        params["dec_blocks"].append(
            (_pad_weight(w), _pad_row(b), _pad_row(gamma), _pad_row(beta)))

    # Decoder output Linear (Tanh applied in-kernel)
    key, k_out = jax.random.split(key)
    w_out, b_out = _init_linear(k_out, decoder_dims[-2], decoder_dims[-1])
    params["w_out"] = _pad_weight(w_out)
    params["b_out"] = _pad_row(b_out)
    return params


# ------------------------------ forward wrapper ------------------------------ #

def hand_vae_forward(params, x, eps):
    """Mirrors HandVAE.forward(eval=False): encode -> sample -> decode."""
    meta = params["meta"]
    B = x.shape[0]
    x_flat = x.reshape(B, -1).astype(jnp.float32)
    eps_flat = eps.reshape(B, -1).astype(jnp.float32)
    assert x_flat.shape[1] == meta["in_dim"] and eps_flat.shape[1] == meta["latent_dim"]

    # Zero-pad activations to 128 lanes (padded columns stay exactly zero in-kernel).
    x_pad = jnp.pad(x_flat, ((0, 0), (0, LANES - x_flat.shape[1])))
    eps_pad = jnp.pad(eps_flat, ((0, 0), (0, LANES - eps_flat.shape[1])))

    n_enc = len(params["enc_blocks"])
    n_dec = len(params["dec_blocks"])

    inputs = [x_pad]
    for blk in params["enc_blocks"]:
        inputs.extend(blk)
    inputs.extend([params["w_ml"], params["b_ml"], eps_pad])
    for blk in params["dec_blocks"]:
        inputs.extend(blk)
    inputs.extend([params["w_out"], params["b_out"]])

    vmem = pl.BlockSpec(memory_space=pltpu.MemorySpace.VMEM)

    out = pl.pallas_call(
        _make_hand_vae_kernel(n_enc, n_dec),
        out_shape=jax.ShapeDtypeStruct((B, 4 * LANES), jnp.float32),
        in_specs=[vmem] * len(inputs),
        out_specs=vmem,
        compiler_params=pltpu.CompilerParams(vmem_limit_bytes=32 * 1024 * 1024),
    )(*inputs)

    L = meta["latent_dim"]
    Dout = meta["out_dim"]
    return {
        "mu": out[:, 0:L],
        "logvar": out[:, LANES:LANES + L],
        "z": out[:, 2 * LANES:2 * LANES + L],
        "x_recon": out[:, 3 * LANES:3 * LANES + Dout],
        "batch_size": B,
    }


# ----------------------------------- main ------------------------------------ #

if __name__ == "__main__":
    # Small config consistent with cfg.MODEL.hand_vae dims.
    encoder_dims = [64, 32, 16]   # input feature -> hidden -> latent
    decoder_dims = [16, 32, 64]   # latent -> hidden -> reconstruction
    B = 8                         # one f32 sublane group; whole batch in one block (BN stats exact)

    key = jax.random.PRNGKey(0)
    k_params, k_x, k_eps = jax.random.split(key, 3)

    params = init_hand_vae_params(k_params, encoder_dims, decoder_dims)
    x = jax.random.normal(k_x, (B, encoder_dims[0]), jnp.float32)
    eps = jax.random.normal(k_eps, (B, encoder_dims[-1]), jnp.float32)

    out = hand_vae_forward(params, x, eps)
    jax.block_until_ready(out["x_recon"])
    jax.block_until_ready(out["z"])

    assert out["mu"].shape == (B, encoder_dims[-1])
    assert out["logvar"].shape == (B, encoder_dims[-1])
    assert out["z"].shape == (B, encoder_dims[-1])
    assert out["x_recon"].shape == (B, decoder_dims[-1])
    assert bool(jnp.all(jnp.isfinite(out["x_recon"])))
    assert bool(jnp.all(jnp.abs(out["x_recon"]) <= 1.0))   # Tanh range

    print("KERNEL_OK")
</pallas_src>

<mosaic_0001>
module attributes {stable_mosaic.version = 11 : i64} {
  func.func @kernel(%arg0: memref<8x128xf32, #tpu.memory_space<vmem>>, %arg1: memref<128x128xbf16, #tpu.memory_space<vmem>>, %arg2: memref<1x128xf32, #tpu.memory_space<vmem>>, %arg3: memref<1x128xf32, #tpu.memory_space<vmem>>, %arg4: memref<1x128xf32, #tpu.memory_space<vmem>>, %arg5: memref<128x256xbf16, #tpu.memory_space<vmem>>, %arg6: memref<1x256xf32, #tpu.memory_space<vmem>>, %arg7: memref<8x128xf32, #tpu.memory_space<vmem>>, %arg8: memref<128x128xbf16, #tpu.memory_space<vmem>>, %arg9: memref<1x128xf32, #tpu.memory_space<vmem>>, %arg10: memref<1x128xf32, #tpu.memory_space<vmem>>, %arg11: memref<1x128xf32, #tpu.memory_space<vmem>>, %arg12: memref<128x128xbf16, #tpu.memory_space<vmem>>, %arg13: memref<1x128xf32, #tpu.memory_space<vmem>>, %arg14: memref<8x512xf32, #tpu.memory_space<vmem>>) attributes {dimension_semantics = [], scalar_prefetch = 0 : i64, scratch_operands = 0 : i64, tpu.core_type = #tpu.core_type<tc>} {
    %c0 = arith.constant 0 : index
    %c0_0 = arith.constant 0 : index
    %0 = vector.load %arg0[%c0, %c0_0] : memref<8x128xf32, #tpu.memory_space<vmem>>, vector<8x128xf32>
    %1 = arith.truncf %0 : vector<8x128xf32> to vector<8x128xbf16>
    %c0_1 = arith.constant 0 : index
    %c0_2 = arith.constant 0 : index
    %2 = vector.load %arg1[%c0_1, %c0_2] : memref<128x128xbf16, #tpu.memory_space<vmem>>, vector<128x128xbf16>
    %cst = arith.constant dense<0.000000e+00> : vector<8x128xf32>
    %3 = tpu.matmul %1, %2, %cst {dimension_numbers = #tpu.dot_dimension_numbers<[1], [0], [0], [1], [0, 0, 1, 1], [], []>} : vector<8x128xbf16>, vector<128x128xbf16>, vector<8x128xf32> -> vector<8x128xf32>
    %c0_3 = arith.constant 0 : index
    %c0_4 = arith.constant 0 : index
    %4 = vector.load %arg2[%c0_3, %c0_4] : memref<1x128xf32, #tpu.memory_space<vmem>>, vector<1x128xf32>
    %5 = vector.broadcast %4 : vector<1x128xf32> to vector<8x128xf32>
    %6 = arith.addf %3, %5 : vector<8x128xf32>
    %c0_5 = arith.constant 0 : index
    %c0_6 = arith.constant 0 : index
    %7 = vector.load %arg3[%c0_5, %c0_6] : memref<1x128xf32, #tpu.memory_space<vmem>>, vector<1x128xf32>
    %c0_7 = arith.constant 0 : index
    %c0_8 = arith.constant 0 : index
    %8 = vector.load %arg4[%c0_7, %c0_8] : memref<1x128xf32, #tpu.memory_space<vmem>>, vector<1x128xf32>
    %cst_9 = arith.constant dense<0.000000e+00> : vector<128xf32>
    %9 = vector.multi_reduction <add>, %6, %cst_9 [0] : vector<8x128xf32> to vector<128xf32>
    %10 = vector.shape_cast %9 : vector<128xf32> to vector<1x128xf32>
    %cst_10 = arith.constant 8.000000e+00 : f32
    %11 = vector.broadcast %cst_10 : f32 to vector<1x128xf32>
    %12 = arith.divf %10, %11 : vector<1x128xf32>
    %13 = vector.broadcast %12 : vector<1x128xf32> to vector<8x128xf32>
    %14 = arith.subf %6, %13 : vector<8x128xf32>
    %15 = arith.mulf %14, %14 : vector<8x128xf32>
    %cst_11 = arith.constant dense<0.000000e+00> : vector<128xf32>
    %16 = vector.multi_reduction <add>, %15, %cst_11 [0] : vector<8x128xf32> to vector<128xf32>
    %17 = vector.shape_cast %16 : vector<128xf32> to vector<1x128xf32>
    %cst_12 = arith.constant 8.000000e+00 : f32
    %18 = vector.broadcast %cst_12 : f32 to vector<1x128xf32>
    %19 = arith.divf %17, %18 : vector<1x128xf32>
    %20 = vector.broadcast %12 : vector<1x128xf32> to vector<8x128xf32>
    %21 = arith.subf %6, %20 : vector<8x128xf32>
    %cst_13 = arith.constant 9.99999974E-6 : f32
    %22 = vector.broadcast %cst_13 : f32 to vector<1x128xf32>
    %23 = arith.addf %19, %22 : vector<1x128xf32>
    %24 = math.rsqrt %23 : vector<1x128xf32>
    %25 = vector.broadcast %24 : vector<1x128xf32> to vector<8x128xf32>
    %26 = arith.mulf %21, %25 : vector<8x128xf32>
    %27 = vector.broadcast %7 : vector<1x128xf32> to vector<8x128xf32>
    %28 = arith.mulf %26, %27 : vector<8x128xf32>
    %29 = vector.broadcast %8 : vector<1x128xf32> to vector<8x128xf32>
    %30 = arith.addf %28, %29 : vector<8x128xf32>
    %cst_14 = arith.constant 0.000000e+00 : f32
    %31 = vector.broadcast %cst_14 : f32 to vector<8x128xf32>
    %32 = arith.maximumf %30, %31 : vector<8x128xf32>
    %33 = arith.truncf %32 : vector<8x128xf32> to vector<8x128xbf16>
    %c0_15 = arith.constant 0 : index
    %c0_16 = arith.constant 0 : index
    %34 = vector.load %arg5[%c0_15, %c0_16] : memref<128x256xbf16, #tpu.memory_space<vmem>>, vector<128x256xbf16>
    %cst_17 = arith.constant dense<0.000000e+00> : vector<8x256xf32>
    %35 = tpu.matmul %33, %34, %cst_17 {dimension_numbers = #tpu.dot_dimension_numbers<[1], [0], [0], [1], [0, 0, 1, 1], [], []>} : vector<8x128xbf16>, vector<128x256xbf16>, vector<8x256xf32> -> vector<8x256xf32>
    %c0_18 = arith.constant 0 : index
    %c0_19 = arith.constant 0 : index
    %36 = vector.load %arg6[%c0_18, %c0_19] : memref<1x256xf32, #tpu.memory_space<vmem>>, vector<1x256xf32>
    %37 = vector.broadcast %36 : vector<1x256xf32> to vector<8x256xf32>
    %38 = arith.addf %35, %37 : vector<8x256xf32>
    %39 = vector.extract_strided_slice %38 {offsets = [0, 0], sizes = [8, 128], strides = [1, 1]} : vector<8x256xf32> to vector<8x128xf32>
    %40 = vector.extract_strided_slice %38 {offsets = [0, 128], sizes = [8, 128], strides = [1, 1]} : vector<8x256xf32> to vector<8x128xf32>
    %cst_20 = arith.constant 5.000000e-01 : f32
    %41 = vector.broadcast %cst_20 : f32 to vector<8x128xf32>
    %42 = arith.mulf %41, %40 : vector<8x128xf32>
    %43 = math.exp %42 : vector<8x128xf32>
    %c0_21 = arith.constant 0 : index
    %c0_22 = arith.constant 0 : index
    %44 = vector.load %arg7[%c0_21, %c0_22] : memref<8x128xf32, #tpu.memory_space<vmem>>, vector<8x128xf32>
    %45 = arith.mulf %43, %44 : vector<8x128xf32>
    %46 = arith.addf %39, %45 : vector<8x128xf32>
    %47 = arith.truncf %46 : vector<8x128xf32> to vector<8x128xbf16>
    %c0_23 = arith.constant 0 : index
    %c0_24 = arith.constant 0 : index
    %48 = vector.load %arg8[%c0_23, %c0_24] : memref<128x128xbf16, #tpu.memory_space<vmem>>, vector<128x128xbf16>
    %cst_25 = arith.constant dense<0.000000e+00> : vector<8x128xf32>
    %49 = tpu.matmul %47, %48, %cst_25 {dimension_numbers = #tpu.dot_dimension_numbers<[1], [0], [0], [1], [0, 0, 1, 1], [], []>} : vector<8x128xbf16>, vector<128x128xbf16>, vector<8x128xf32> -> vector<8x128xf32>
    %c0_26 = arith.constant 0 : index
    %c0_27 = arith.constant 0 : index
    %50 = vector.load %arg9[%c0_26, %c0_27] : memref<1x128xf32, #tpu.memory_space<vmem>>, vector<1x128xf32>
    %51 = vector.broadcast %50 : vector<1x128xf32> to vector<8x128xf32>
    %52 = arith.addf %49, %51 : vector<8x128xf32>
    %c0_28 = arith.constant 0 : index
    %c0_29 = arith.constant 0 : index
    %53 = vector.load %arg10[%c0_28, %c0_29] : memref<1x128xf32, #tpu.memory_space<vmem>>, vector<1x128xf32>
    %c0_30 = arith.constant 0 : index
    %c0_31 = arith.constant 0 : index
    %54 = vector.load %arg11[%c0_30, %c0_31] : memref<1x128xf32, #tpu.memory_space<vmem>>, vector<1x128xf32>
    %cst_32 = arith.constant dense<0.000000e+00> : vector<128xf32>
    %55 = vector.multi_reduction <add>, %52, %cst_32 [0] : vector<8x128xf32> to vector<128xf32>
    %56 = vector.shape_cast %55 : vector<128xf32> to vector<1x128xf32>
    %cst_33 = arith.constant 8.000000e+00 : f32
    %57 = vector.broadcast %cst_33 : f32 to vector<1x128xf32>
    %58 = arith.divf %56, %57 : vector<1x128xf32>
    %59 = vector.broadcast %58 : vector<1x128xf32> to vector<8x128xf32>
    %60 = arith.subf %52, %59 : vector<8x128xf32>
    %61 = arith.mulf %60, %60 : vector<8x128xf32>
    %cst_34 = arith.constant dense<0.000000e+00> : vector<128xf32>
    %62 = vector.multi_reduction <add>, %61, %cst_34 [0] : vector<8x128xf32> to vector<128xf32>
    %63 = vector.shape_cast %62 : vector<128xf32> to vector<1x128xf32>
    %cst_35 = arith.constant 8.000000e+00 : f32
    %64 = vector.broadcast %cst_35 : f32 to vector<1x128xf32>
    %65 = arith.divf %63, %64 : vector<1x128xf32>
    %66 = vector.broadcast %58 : vector<1x128xf32> to vector<8x128xf32>
    %67 = arith.subf %52, %66 : vector<8x128xf32>
    %cst_36 = arith.constant 9.99999974E-6 : f32
    %68 = vector.broadcast %cst_36 : f32 to vector<1x128xf32>
    %69 = arith.addf %65, %68 : vector<1x128xf32>
    %70 = math.rsqrt %69 : vector<1x128xf32>
    %71 = vector.broadcast %70 : vector<1x128xf32> to vector<8x128xf32>
    %72 = arith.mulf %67, %71 : vector<8x128xf32>
    %73 = vector.broadcast %53 : vector<1x128xf32> to vector<8x128xf32>
    %74 = arith.mulf %72, %73 : vector<8x128xf32>
    %75 = vector.broadcast %54 : vector<1x128xf32> to vector<8x128xf32>
    %76 = arith.addf %74, %75 : vector<8x128xf32>
    %cst_37 = arith.constant 0.000000e+00 : f32
    %77 = vector.broadcast %cst_37 : f32 to vector<8x128xf32>
    %78 = arith.maximumf %76, %77 : vector<8x128xf32>
    %79 = arith.truncf %78 : vector<8x128xf32> to vector<8x128xbf16>
    %c0_38 = arith.constant 0 : index
    %c0_39 = arith.constant 0 : index
    %80 = vector.load %arg12[%c0_38, %c0_39] : memref<128x128xbf16, #tpu.memory_space<vmem>>, vector<128x128xbf16>
    %cst_40 = arith.constant dense<0.000000e+00> : vector<8x128xf32>
    %81 = tpu.matmul %79, %80, %cst_40 {dimension_numbers = #tpu.dot_dimension_numbers<[1], [0], [0], [1], [0, 0, 1, 1], [], []>} : vector<8x128xbf16>, vector<128x128xbf16>, vector<8x128xf32> -> vector<8x128xf32>
    %c0_41 = arith.constant 0 : index
    %c0_42 = arith.constant 0 : index
    %82 = vector.load %arg13[%c0_41, %c0_42] : memref<1x128xf32, #tpu.memory_space<vmem>>, vector<1x128xf32>
    %83 = vector.broadcast %82 : vector<1x128xf32> to vector<8x128xf32>
    %84 = arith.addf %81, %83 : vector<8x128xf32>
    %85 = math.tanh %84 : vector<8x128xf32>
    %c0_43 = arith.constant 0 : index
    %c0_44 = arith.constant 0 : index
    %86 = vector.load %arg14[%c0_43, %c0_44] : memref<8x512xf32, #tpu.memory_space<vmem>>, vector<8x256xf32>
    tpu.vector_store %arg14[%c0_43, %c0_44], %38 {strides = array<i32>} : memref<8x512xf32, #tpu.memory_space<vmem>>, vector<8x256xf32>,
    %c0_45 = arith.constant 0 : index
    %c256 = arith.constant 256 : index
    %87 = vector.load %arg14[%c0_45, %c256] : memref<8x512xf32, #tpu.memory_space<vmem>>, vector<8x128xf32>
    tpu.vector_store %arg14[%c0_45, %c256], %46 {strides = array<i32>} : memref<8x512xf32, #tpu.memory_space<vmem>>, vector<8x128xf32>,
    %c0_46 = arith.constant 0 : index
    %c384 = arith.constant 384 : index
    %88 = vector.load %arg14[%c0_46, %c384] : memref<8x512xf32, #tpu.memory_space<vmem>>, vector<8x128xf32>
    tpu.vector_store %arg14[%c0_46, %c384], %85 {strides = array<i32>} : memref<8x512xf32, #tpu.memory_space<vmem>>, vector<8x128xf32>,
    return
  }
}

</mosaic_0001>

<llo_original>
// kernel: tpu_custom_call.1
$region0: #{tpu_custom_call.1}
  #allocation0 [shape = 'u32[]', space=smem, size = 0x4, offset = 0x4, fixed_abs, tag = 'smem constant byte address 0x4 - core index']
  #allocation1 [shape = 'u32[144,128]{1,0:T(1,128)}', space=vmem, size = 0x12000, scoped, tag = 'internal scratch']
  %s0 = inlined_call_operand.hbm [shape: f32[8,128], index: 0, kind: input, shape index: {}]
  %s1 = inlined_call_operand.hbm [shape: bf16[128,128], index: 1, kind: input, shape index: {}]
  %s2 = inlined_call_operand.vmem [shape: f32[1,128], index: 2, kind: input, shape index: {}]
  %s3 = inlined_call_operand.vmem [shape: f32[1,128], index: 3, kind: input, shape index: {}]
  %s4 = inlined_call_operand.vmem [shape: f32[1,128], index: 4, kind: input, shape index: {}]
  %s5 = inlined_call_operand.hbm [shape: bf16[128,256], index: 5, kind: input, shape index: {}]
  %s6 = inlined_call_operand.vmem [shape: f32[1,256], index: 6, kind: input, shape index: {}]
  %s7 = inlined_call_operand.vmem [shape: f32[8,128], index: 7, kind: input, shape index: {}]
  %s8 = inlined_call_operand.hbm [shape: bf16[128,128], index: 8, kind: input, shape index: {}]
  %s9 = inlined_call_operand.vmem [shape: f32[1,128], index: 9, kind: input, shape index: {}]
  %s10 = inlined_call_operand.vmem [shape: f32[1,128], index: 10, kind: input, shape index: {}]
  %s11 = inlined_call_operand.vmem [shape: f32[1,128], index: 11, kind: input, shape index: {}]
  %s12 = inlined_call_operand.hbm [shape: bf16[128,128], index: 12, kind: input, shape index: {}]
  %s13 = inlined_call_operand.vmem [shape: f32[1,128], index: 13, kind: input, shape index: {}]
  %s14 = inlined_call_operand.hbm [shape: f32[8,512], index: 14, kind: output, shape index: {}]
  %s15 = sld [smem:[#allocation0]]
  $region86: #{tpu_custom_call.1} parent=0
    _
  %s17 = ssub.s32 1, %s15
  %s18 = scalar_select 0, %s17, %s15
  $region1: #{tpu_custom_call.1} parent=0
    #allocation2 [shape = 'u8[4096]{0}', space=vmem, size = 0x1000, scoped, tag = 'input window, operand 0, single buffered']
    #allocation3 [shape = 's32[1]{0}', space=sflag, size = 0x4, scoped, tag = 'scoped memory for tpu_custom_call.1']
    #allocation4 [shape = 's32[1]{0}', space=sflag, size = 0x4, scoped, tag = 'scoped memory for tpu_custom_call.1']
    #allocation5 [shape = 'u8[32768]{0}', space=vmem, size = 0x8000, scoped, tag = 'input window, operand 1, single buffered']
    #allocation6 [shape = 's32[1]{0}', space=sflag, size = 0x4, scoped, tag = 'scoped memory for tpu_custom_call.1']
    #allocation7 [shape = 'u8[65536]{0}', space=vmem, size = 0x10000, scoped, tag = 'input window, operand 5, single buffered']
    #allocation8 [shape = 'u8[32768]{0}', space=vmem, size = 0x8000, scoped, tag = 'input window, operand 8, single buffered']
    #allocation9 [shape = 's32[1]{0}', space=sflag, size = 0x4, scoped, tag = 'scoped memory for tpu_custom_call.1']
    #allocation10 [shape = 'u8[32768]{0}', space=vmem, size = 0x8000, scoped, tag = 'input window, operand 12, single buffered']
    #allocation11 [shape = 'u8[16384]{0}', space=vmem, size = 0x4000, scoped, tag = 'output window, operand 0, single buffered']
    %19 = vsyncpa [#allocation3], 0
    %20 = vsyncpa [#allocation6], 0
    %21 = vsyncpa [#allocation9], 0
    %22 = vsyncpa [#allocation4], 0
    // Predicated region
    $region2: #{tpu_custom_call.1} parent=1 // pred_check
      _
    $region3: #{tpu_custom_call.1} parent=1 // pred_check_branch
      %24 = sbr.rel (0) target = $region5
    $region4: #{tpu_custom_call.1} parent=1 // pred_region
      %s26 = ssub.s32 128, 128
      %27 = vsyncadd [#allocation3], %s26
      %s29 = sshll.u32 [#allocation2], 4
      %s30 = int_to_ptr.vmem [resolvable:$true] %s29
      %32 = dma.hbm_to_vmem [thread:$0]  %s0, 128, %s30, [#allocation3]
    $region5: #{tpu_custom_call.1} parent=1 // pred_fallthru
      _
    // Predicated region
    $region6: #{tpu_custom_call.1} parent=1 // pred_check
      _
    $region7: #{tpu_custom_call.1} parent=1 // pred_check_branch
      %34 = sbr.rel (0) target = $region9
    $region8: #{tpu_custom_call.1} parent=1 // pred_region
      %s36 = ssub.s32 1024, 1024
      %37 = vsyncadd [#allocation6], %s36
      %s38 = sshll.u32 [#allocation5], 4
      %s39 = int_to_ptr.vmem [resolvable:$true] %s38
      %44 = dma.hbm_to_vmem [thread:$0]  %s1, 1024, %s39, [#allocation6], 64, 64, 4
    $region9: #{tpu_custom_call.1} parent=1 // pred_fallthru
      _
    // Predicated region
    $region10: #{tpu_custom_call.1} parent=1 // pred_check
      _
    $region11: #{tpu_custom_call.1} parent=1 // pred_check_branch
      %46 = sbr.rel (0) target = $region13
    $region12: #{tpu_custom_call.1} parent=1 // pred_region
      _
    $region13: #{tpu_custom_call.1} parent=1 // pred_fallthru
      _
    // Predicated region
    $region14: #{tpu_custom_call.1} parent=1 // pred_check
      _
    $region15: #{tpu_custom_call.1} parent=1 // pred_check_branch
      %48 = sbr.rel (0) target = $region17
    $region16: #{tpu_custom_call.1} parent=1 // pred_region
      _
    $region17: #{tpu_custom_call.1} parent=1 // pred_fallthru
      _
    // Predicated region
    $region18: #{tpu_custom_call.1} parent=1 // pred_check
      _
    $region19: #{tpu_custom_call.1} parent=1 // pred_check_branch
      %50 = sbr.rel (0) target = $region21
    $region20: #{tpu_custom_call.1} parent=1 // pred_region
      _
    $region21: #{tpu_custom_call.1} parent=1 // pred_fallthru
      _
    // Predicated region
    $region22: #{tpu_custom_call.1} parent=1 // pred_check
      _
    $region23: #{tpu_custom_call.1} parent=1 // pred_check_branch
      %52 = sbr.rel (0) target = $region25
    $region24: #{tpu_custom_call.1} parent=1 // pred_region
      %s54 = ssub.s32 2048, 2048
      %55 = vsyncadd [#allocation6], %s54
      %s56 = sshll.u32 [#allocation7], 4
      %s57 = int_to_ptr.vmem [resolvable:$true] %s56
      %62 = dma.hbm_to_vmem [thread:$0]  %s5, 2048, %s57, [#allocation6], 128, 128, 8
    $region25: #{tpu_custom_call.1} parent=1 // pred_fallthru
      _
    // Predicated region
    $region26: #{tpu_custom_call.1} parent=1 // pred_check
      _
    $region27: #{tpu_custom_call.1} parent=1 // pred_check_branch
      %64 = sbr.rel (0) target = $region29
    $region28: #{tpu_custom_call.1} parent=1 // pred_region
      _
    $region29: #{tpu_custom_call.1} parent=1 // pred_fallthru
      _
    // Predicated region
    $region30: #{tpu_custom_call.1} parent=1 // pred_check
      _
    $region31: #{tpu_custom_call.1} parent=1 // pred_check_branch
      %66 = sbr.rel (0) target = $region33
    $region32: #{tpu_custom_call.1} parent=1 // pred_region
      _
    $region33: #{tpu_custom_call.1} parent=1 // pred_fallthru
      _
    // Predicated region
    $region34: #{tpu_custom_call.1} parent=1 // pred_check
      _
    $region35: #{tpu_custom_call.1} parent=1 // pred_check_branch
      %68 = sbr.rel (0) target = $region37
    $region36: #{tpu_custom_call.1} parent=1 // pred_region
      %s70 = ssub.s32 1024, 1024
      %71 = vsyncadd [#allocation9], %s70
      %s72 = sshll.u32 [#allocation8], 4
      %s73 = int_to_ptr.vmem [resolvable:$true] %s72
      %78 = dma.hbm_to_vmem [thread:$0]  %s8, 1024, %s73, [#allocation9], 64, 64, 4
    $region37: #{tpu_custom_call.1} parent=1 // pred_fallthru
      _
    // Predicated region
    $region38: #{tpu_custom_call.1} parent=1 // pred_check
      _
    $region39: #{tpu_custom_call.1} parent=1 // pred_check_branch
      %80 = sbr.rel (0) target = $region41
    $region40: #{tpu_custom_call.1} parent=1 // pred_region
      _
    $region41: #{tpu_custom_call.1} parent=1 // pred_fallthru
      _
    // Predicated region
    $region42: #{tpu_custom_call.1} parent=1 // pred_check
      _
    $region43: #{tpu_custom_call.1} parent=1 // pred_check_branch
      %82 = sbr.rel (0) target = $region45
    $region44: #{tpu_custom_call.1} parent=1 // pred_region
      _
    $region45: #{tpu_custom_call.1} parent=1 // pred_fallthru
      _
    // Predicated region
    $region46: #{tpu_custom_call.1} parent=1 // pred_check
      _
    $region47: #{tpu_custom_call.1} parent=1 // pred_check_branch
      %84 = sbr.rel (0) target = $region49
    $region48: #{tpu_custom_call.1} parent=1 // pred_region
      _
    $region49: #{tpu_custom_call.1} parent=1 // pred_fallthru
      _
    // Predicated region
    $region50: #{tpu_custom_call.1} parent=1 // pred_check
      _
    $region51: #{tpu_custom_call.1} parent=1 // pred_check_branch
      %86 = sbr.rel (0) target = $region53
    $region52: #{tpu_custom_call.1} parent=1 // pred_region
      %s88 = ssub.s32 1024, 1024
      %89 = vsyncadd [#allocation9], %s88
      %s90 = sshll.u32 [#allocation10], 4
      %s91 = int_to_ptr.vmem [resolvable:$true] %s90
      %96 = dma.hbm_to_vmem [thread:$0]  %s12, 1024, %s91, [#allocation9], 64, 64, 4
    $region53: #{tpu_custom_call.1} parent=1 // pred_fallthru
      _
    // Predicated region
    $region54: #{tpu_custom_call.1} parent=1 // pred_check
      _
    $region55: #{tpu_custom_call.1} parent=1 // pred_check_branch
      %98 = sbr.rel (0) target = $region57
    $region56: #{tpu_custom_call.1} parent=1 // pred_region
      _
    $region57: #{tpu_custom_call.1} parent=1 // pred_fallthru
      _
    // Predicated region
    $region58: #{tpu_custom_call.1} parent=1 // pred_check
      _
    $region59: #{tpu_custom_call.1} parent=1 // pred_check_branch
      %100 = sbr.rel (0) target = $region61
    $region60: #{tpu_custom_call.1} parent=1 // pred_region
      %101 = dma.done [#allocation3], 128
    $region61: #{tpu_custom_call.1} parent=1 // pred_fallthru
      _
    // Predicated region
    $region62: #{tpu_custom_call.1} parent=1 // pred_check
      _
    $region63: #{tpu_custom_call.1} parent=1 // pred_check_branch
      %103 = sbr.rel (0) target = $region65
    $region64: #{tpu_custom_call.1} parent=1 // pred_region
      %104 = dma.done [#allocation6], 1024
    $region65: #{tpu_custom_call.1} parent=1 // pred_fallthru
      _
    // Predicated region
    $region66: #{tpu_custom_call.1} parent=1 // pred_check
      _
    $region67: #{tpu_custom_call.1} parent=1 // pred_check_branch
      %106 = sbr.rel (0) target = $region69
    $region68: #{tpu_custom_call.1} parent=1 // pred_region
      %107 = dma.done [#allocation6], 2048
    $region69: #{tpu_custom_call.1} parent=1 // pred_fallthru
      _
    // Predicated region
    $region70: #{tpu_custom_call.1} parent=1 // pred_check
      _
    $region71: #{tpu_custom_call.1} parent=1 // pred_check_branch
      %109 = sbr.rel (0) target = $region73
    $region72: #{tpu_custom_call.1} parent=1 // pred_region
      %110 = dma.done [#allocation9], 1024
    $region73: #{tpu_custom_call.1} parent=1 // pred_fallthru
      _
    // Predicated region
    $region74: #{tpu_custom_call.1} parent=1 // pred_check
      _
    $region75: #{tpu_custom_call.1} parent=1 // pred_check_branch
      %112 = sbr.rel (0) target = $region77
    $region76: #{tpu_custom_call.1} parent=1 // pred_region
      %113 = dma.done [#allocation9], 1024
    $region77: #{tpu_custom_call.1} parent=1 // pred_fallthru
      _
    %v115 = vld [vmem:[#allocation2] sm:$0xff]
    %v116 = vpack.c.bf16 %v115, %v115
    %v117 = vld [vmem:[#allocation5] sm:$0xf]
    %v118 = vld [vmem:[#allocation5 + $0x4] sm:$0xf]
    %v119 = vld [vmem:[#allocation5 + $0x8] sm:$0xf]
    %v120 = vld [vmem:[#allocation5 + $0xc] sm:$0xf]
    %v121 = vld [vmem:[#allocation5 + $0x10] sm:$0xf]
    %v122 = vld [vmem:[#allocation5 + $0x14] sm:$0xf]
    %v123 = vld [vmem:[#allocation5 + $0x18] sm:$0xf]
    %v124 = vld [vmem:[#allocation5 + $0x1c] sm:$0xf]
    %v125 = vld [vmem:[#allocation5 + $0x20] sm:$0xf]
    %v126 = vld [vmem:[#allocation5 + $0x24] sm:$0xf]
    %v127 = vld [vmem:[#allocation5 + $0x28] sm:$0xf]
    %v128 = vld [vmem:[#allocation5 + $0x2c] sm:$0xf]
    %v129 = vld [vmem:[#allocation5 + $0x30] sm:$0xf]
    %v130 = vld [vmem:[#allocation5 + $0x34] sm:$0xf]
    %v131 = vld [vmem:[#allocation5 + $0x38] sm:$0xf]
    %v132 = vld [vmem:[#allocation5 + $0x3c] sm:$0xf]
    %v133 = vld [vmem:[%s2] sm:$0x1]
    %v135 = vlaneseq
    %v136 = vshrl.u32 %v135, 7
    %v137 = vsub.s32 0, %v136
    %v138 = vrot.slane %v133, %v137
    %v156 = vunpack.c.l.b16 %v117
    %v157 = vunpack.c.l.b16 %v118
    %v158 = vunpack.c.l.b16 %v119
    %v159 = vunpack.c.l.b16 %v120
    %v160 = vunpack.c.l.b16 %v121
    %v161 = vunpack.c.l.b16 %v122
    %v162 = vunpack.c.l.b16 %v123
    %v163 = vunpack.c.l.b16 %v124
    %v164 = vunpack.c.l.b16 %v125
    %v165 = vunpack.c.l.b16 %v126
    %v166 = vunpack.c.l.b16 %v127
    %v167 = vunpack.c.l.b16 %v128
    %v168 = vunpack.c.l.b16 %v129
    %v169 = vunpack.c.l.b16 %v130
    %v170 = vunpack.c.l.b16 %v131
    %v171 = vunpack.c.l.b16 %v132
    %v172 = vpack.c.b16 %v157, %v156
    %v173 = vpack.c.b16 %v159, %v158
    %v174 = vpack.c.b16 %v161, %v160
    %v175 = vpack.c.b16 %v163, %v162
    %v176 = vpack.c.b16 %v165, %v164
    %v177 = vpack.c.b16 %v167, %v166
    %v178 = vpack.c.b16 %v169, %v168
    %v179 = vpack.c.b16 %v171, %v170
    %188 = vmatprep.subr.bf16.mxu0 0
    %189 = vmatpush1.bf16.msra.mxu0 %v172
    %190 = vmatprep.subr.bf16.mxu0 0
    %191 = vmatpush1.bf16.msra.mxu0 %v173
    %192 = vmatprep.subr.bf16.mxu0 0
    %193 = vmatpush1.bf16.msra.mxu0 %v174
    %194 = vmatprep.subr.bf16.mxu0 0
    %195 = vmatpush1.bf16.msra.mxu0 %v175
    %196 = vmatprep.subr.bf16.mxu0 0
    %197 = vmatpush1.bf16.msra.mxu0 %v176
    %198 = vmatprep.subr.bf16.mxu0 0
    %199 = vmatpush1.bf16.msra.mxu0 %v177
    %200 = vmatprep.subr.bf16.mxu0 0
    %201 = vmatpush1.bf16.msra.mxu0 %v178
    %202 = vmatprep.subr.bf16.mxu0 0
    %203 = vmatpush1.bf16.msra.mxu0 %v179
    %204 = vmatprep.subr.bf16.mxu0 0
    %205 = vmatpush1.bf16.msra.mxu0 0
    %206 = vmatprep.subr.bf16.mxu0 0
    %207 = vmatpush1.bf16.msra.mxu0 0
    %208 = vmatprep.subr.bf16.mxu0 0
    %209 = vmatpush1.bf16.msra.mxu0 0
    %210 = vmatprep.subr.bf16.mxu0 0
    %211 = vmatpush1.bf16.msra.mxu0 0
    %212 = vmatprep.subr.bf16.mxu0 0
    %213 = vmatpush1.bf16.msra.mxu0 0
    %214 = vmatprep.subr.bf16.mxu0 0
    %215 = vmatpush1.bf16.msra.mxu0 0
    %216 = vmatprep.subr.bf16.mxu0 0
    %217 = vmatpush1.bf16.msra.mxu0 0
    %218 = vmatprep.subr.bf16.mxu0 0
    %219 = vmatpush1.bf16.msra.mxu0 0
    %220 = vmatprep.mubr.bf16.mxu0 0
    %221 = vmatmul.mubr.bf16.gmra.mrb[0].mxu0 %v116
    %v222 = vpop.f32.mrb[0].mxu0
    %v223 = vadd.f32 %v138, %v222
    %v224 = vpop.f32.mrb[0].mxu0
    %v225 = vpop.f32.mrb[0].mxu0
    %v226 = vpop.f32.mrb[0].mxu0
    %227 = vdwg.mxu0
    %v228 = vld [vmem:[%s3] sm:$0x1]
    %v229 = vld [vmem:[%s4] sm:$0x1]
    %v230 = vrot.slane %v223, 4
    %v231 = vadd.f32 %v223, %v230
    %v232 = vrot.slane %v231, 2
    %v233 = vadd.f32 %v231, %v232
    %v234 = vrot.slane %v233, 1
    %v235 = vadd.f32 %v233, %v234
    %v236 = vrcp.pop 8.0
    %v237 = vmul.f32 %v235, %v236
    %v238 = vsub.f32 %v223, %v237
    %v239 = vmul.f32 %v238, %v238
    %v240 = vrot.slane %v239, 4
    %v241 = vadd.f32 %v239, %v240
    %v242 = vrot.slane %v241, 2
    %v243 = vadd.f32 %v241, %v242
    %v244 = vrot.slane %v243, 1
    %v245 = vadd.f32 %v243, %v244
    %v246 = vmul.f32 %v245, %v236
    %v247 = vadd.f32 %v246, 1e-05
    %v248 = vrsqrt.pop %v247
    %v249 = vmul.f32 %v238, %v248
    %v251 = vlaneseq
    %v252 = vshrl.u32 %v251, 7
    %v253 = vsub.s32 0, %v252
    %v254 = vrot.slane %v228, %v253
    %v256 = vmul.f32 %v249, %v254
    %v258 = vlaneseq
    %v259 = vshrl.u32 %v258, 7
    %v260 = vsub.s32 0, %v259
    %v261 = vrot.slane %v229, %v260
    %v263 = vadd.f32 %v256, %v261
    %v264 = vmax.f32 %v263, 0.0
    %v265 = vpack.c.bf16 %v264, %v264
    %v266 = vld [vmem:[#allocation7] sm:$0xff]
    %v267 = vld [vmem:[#allocation7 + $0x8] sm:$0xff]
    %v268 = vld [vmem:[#allocation7 + $0x10] sm:$0xff]
    %v269 = vld [vmem:[#allocation7 + $0x18] sm:$0xff]
    %v270 = vld [vmem:[#allocation7 + $0x20] sm:$0xff]
    %v271 = vld [vmem:[#allocation7 + $0x28] sm:$0xff]
    %v272 = vld [vmem:[#allocation7 + $0x30] sm:$0xff]
    %v273 = vld [vmem:[#allocation7 + $0x38] sm:$0xff]
    %v274 = vld [vmem:[#allocation7 + $0x40] sm:$0xff]
    %v275 = vld [vmem:[#allocation7 + $0x48] sm:$0xff]
    %v276 = vld [vmem:[#allocation7 + $0x50] sm:$0xff]
    %v277 = vld [vmem:[#allocation7 + $0x58] sm:$0xff]
    %v278 = vld [vmem:[#allocation7 + $0x60] sm:$0xff]
    %v279 = vld [vmem:[#allocation7 + $0x68] sm:$0xff]
    %v280 = vld [vmem:[#allocation7 + $0x70] sm:$0xff]
    %v281 = vld [vmem:[#allocation7 + $0x78] sm:$0xff]
    %v282 = vld [vmem:[%s6] sm:$0x3]
    %v284 = vlaneseq
    %v285 = vshrl.u32 %v284, 7
    %v286 = vsub.s32 0, %v285
    %v287 = vrot.slane %v282, %v286
    %v288 = vlaneseq
    %v289 = vshrl.u32 %v288, 7
    %v290 = vsub.s32 1, %v289
    %v291 = vrot.slane %v282, %v290
    %v310 = vunpack.c.l.b16 %v266
    %v311 = vunpack.c.h.b16 %v266
    %v312 = vunpack.c.l.b16 %v267
    %v313 = vunpack.c.h.b16 %v267
    %v314 = vunpack.c.l.b16 %v268
    %v315 = vunpack.c.h.b16 %v268
    %v316 = vunpack.c.l.b16 %v269
    %v317 = vunpack.c.h.b16 %v269
    %v318 = vunpack.c.l.b16 %v270
    %v319 = vunpack.c.h.b16 %v270
    %v320 = vunpack.c.l.b16 %v271
    %v321 = vunpack.c.h.b16 %v271
    %v322 = vunpack.c.l.b16 %v272
    %v323 = vunpack.c.h.b16 %v272
    %v324 = vunpack.c.l.b16 %v273
    %v325 = vunpack.c.h.b16 %v273
    %v326 = vunpack.c.l.b16 %v274
    %v327 = vunpack.c.h.b16 %v274
    %v328 = vunpack.c.l.b16 %v275
    %v329 = vunpack.c.h.b16 %v275
    %v330 = vunpack.c.l.b16 %v276
    %v331 = vunpack.c.h.b16 %v276
    %v332 = vunpack.c.l.b16 %v277
    %v333 = vunpack.c.h.b16 %v277
    %v334 = vunpack.c.l.b16 %v278
    %v335 = vunpack.c.h.b16 %v278
    %v336 = vunpack.c.l.b16 %v279
    %v337 = vunpack.c.h.b16 %v279
    %v338 = vunpack.c.l.b16 %v280
    %v339 = vunpack.c.h.b16 %v280
    %v340 = vunpack.c.l.b16 %v281
    %v341 = vunpack.c.h.b16 %v281
    %v342 = vpack.c.b16 %v312, %v310
    %v343 = vpack.c.b16 %v313, %v311
    %v344 = vpack.c.b16 %v316, %v314
    %v345 = vpack.c.b16 %v317, %v315
    %v346 = vpack.c.b16 %v320, %v318
    %v347 = vpack.c.b16 %v321, %v319
    %v348 = vpack.c.b16 %v324, %v322
    %v349 = vpack.c.b16 %v325, %v323
    %v350 = vpack.c.b16 %v328, %v326
    %v351 = vpack.c.b16 %v329, %v327
    %v352 = vpack.c.b16 %v332, %v330
    %v353 = vpack.c.b16 %v333, %v331
    %v354 = vpack.c.b16 %v336, %v334
    %v355 = vpack.c.b16 %v337, %v335
    %v356 = vpack.c.b16 %v340, %v338
    %v357 = vpack.c.b16 %v341, %v339
    %374 = vmatprep.subr.bf16.mxu0 %v343
    %375 = vmatpush1.bf16.msra.mxu0 %v342
    %376 = vmatprep.subr.bf16.mxu0 %v345
    %377 = vmatpush1.bf16.msra.mxu0 %v344
    %378 = vmatprep.subr.bf16.mxu0 %v347
    %379 = vmatpush1.bf16.msra.mxu0 %v346
    %380 = vmatprep.subr.bf16.mxu0 %v349
    %381 = vmatpush1.bf16.msra.mxu0 %v348
    %382 = vmatprep.subr.bf16.mxu0 %v351
    %383 = vmatpush1.bf16.msra.mxu0 %v350
    %384 = vmatprep.subr.bf16.mxu0 %v353
    %385 = vmatpush1.bf16.msra.mxu0 %v352
    %386 = vmatprep.subr.bf16.mxu0 %v355
    %387 = vmatpush1.bf16.msra.mxu0 %v354
    %388 = vmatprep.subr.bf16.mxu0 %v357
    %389 = vmatpush1.bf16.msra.mxu0 %v356
    %390 = vmatprep.subr.bf16.mxu0 0
    %391 = vmatpush1.bf16.msra.mxu0 0
    %392 = vmatprep.subr.bf16.mxu0 0
    %393 = vmatpush1.bf16.msra.mxu0 0
    %394 = vmatprep.subr.bf16.mxu0 0
    %395 = vmatpush1.bf16.msra.mxu0 0
    %396 = vmatprep.subr.bf16.mxu0 0
    %397 = vmatpush1.bf16.msra.mxu0 0
    %398 = vmatprep.subr.bf16.mxu0 0
    %399 = vmatpush1.bf16.msra.mxu0 0
    %400 = vmatprep.subr.bf16.mxu0 0
    %401 = vmatpush1.bf16.msra.mxu0 0
    %402 = vmatprep.subr.bf16.mxu0 0
    %403 = vmatpush1.bf16.msra.mxu0 0
    %404 = vmatprep.subr.bf16.mxu0 0
    %405 = vmatpush1.bf16.msra.mxu0 0
    %406 = vmatprep.mubr.bf16.mxu0 0
    %407 = vmatmul.mubr.bf16.gmra.mrb[0].mxu0 %v265
    %v408 = vpop.f32.mrb[0].mxu0
    %v409 = vadd.f32 %v287, %v408
    %v410 = vpop.f32.mrb[0].mxu0
    %v411 = vadd.f32 %v291, %v410
    %v412 = vpop.f32.mrb[0].mxu0
    %v413 = vpop.f32.mrb[0].mxu0
    %414 = vdwg.mxu0
    %v415 = vmul.f32 %v411, 0.5
    %v416 = vmul.f32 %v415, 1.442695
    %v417 = vpow.pop %v416
    %v418 = vld [vmem:[%s7] sm:$0xff]
    %v419 = vmul.f32 %v417, %v418
    %v420 = vadd.f32 %v409, %v419
    %v421 = vpack.c.bf16 %v420, %v420
    %v422 = vld [vmem:[#allocation8] sm:$0xf]
    %v423 = vld [vmem:[#allocation8 + $0x4] sm:$0xf]
    %v424 = vld [vmem:[#allocation8 + $0x8] sm:$0xf]
    %v425 = vld [vmem:[#allocation8 + $0xc] sm:$0xf]
    %v426 = vld [vmem:[#allocation8 + $0x10] sm:$0xf]
    %v427 = vld [vmem:[#allocation8 + $0x14] sm:$0xf]
    %v428 = vld [vmem:[#allocation8 + $0x18] sm:$0xf]
    %v429 = vld [vmem:[#allocation8 + $0x1c] sm:$0xf]
    %v430 = vld [vmem:[#allocation8 + $0x20] sm:$0xf]
    %v431 = vld [vmem:[#allocation8 + $0x24] sm:$0xf]
    %v432 = vld [vmem:[#allocation8 + $0x28] sm:$0xf]
    %v433 = vld [vmem:[#allocation8 + $0x2c] sm:$0xf]
    %v434 = vld [vmem:[#allocation8 + $0x30] sm:$0xf]
    %v435 = vld [vmem:[#allocation8 + $0x34] sm:$0xf]
    %v436 = vld [vmem:[#allocation8 + $0x38] sm:$0xf]
    %v437 = vld [vmem:[#allocation8 + $0x3c] sm:$0xf]
    %v438 = vld [vmem:[%s9] sm:$0x1]
    %v440 = vlaneseq
    %v441 = vshrl.u32 %v440, 7
    %v442 = vsub.s32 0, %v441
    %v443 = vrot.slane %v438, %v442
    %v461 = vunpack.c.l.b16 %v422
    %v462 = vunpack.c.l.b16 %v423
    %v463 = vunpack.c.l.b16 %v424
    %v464 = vunpack.c.l.b16 %v425
    %v465 = vunpack.c.l.b16 %v426
    %v466 = vunpack.c.l.b16 %v427
    %v467 = vunpack.c.l.b16 %v428
    %v468 = vunpack.c.l.b16 %v429
    %v469 = vunpack.c.l.b16 %v430
    %v470 = vunpack.c.l.b16 %v431
    %v471 = vunpack.c.l.b16 %v432
    %v472 = vunpack.c.l.b16 %v433
    %v473 = vunpack.c.l.b16 %v434
    %v474 = vunpack.c.l.b16 %v435
    %v475 = vunpack.c.l.b16 %v436
    %v476 = vunpack.c.l.b16 %v437
    %v477 = vpack.c.b16 %v462, %v461
    %v478 = vpack.c.b16 %v464, %v463
    %v479 = vpack.c.b16 %v466, %v465
    %v480 = vpack.c.b16 %v468, %v467
    %v481 = vpack.c.b16 %v470, %v469
    %v482 = vpack.c.b16 %v472, %v471
    %v483 = vpack.c.b16 %v474, %v473
    %v484 = vpack.c.b16 %v476, %v475
    %493 = vmatprep.subr.bf16.mxu0 0
    %494 = vmatpush1.bf16.msra.mxu0 %v477
    %495 = vmatprep.subr.bf16.mxu0 0
    %496 = vmatpush1.bf16.msra.mxu0 %v478
    %497 = vmatprep.subr.bf16.mxu0 0
    %498 = vmatpush1.bf16.msra.mxu0 %v479
    %499 = vmatprep.subr.bf16.mxu0 0
    %500 = vmatpush1.bf16.msra.mxu0 %v480
    %501 = vmatprep.subr.bf16.mxu0 0
    %502 = vmatpush1.bf16.msra.mxu0 %v481
    %503 = vmatprep.subr.bf16.mxu0 0
    %504 = vmatpush1.bf16.msra.mxu0 %v482
    %505 = vmatprep.subr.bf16.mxu0 0
    %506 = vmatpush1.bf16.msra.mxu0 %v483
    %507 = vmatprep.subr.bf16.mxu0 0
    %508 = vmatpush1.bf16.msra.mxu0 %v484
    %509 = vmatprep.subr.bf16.mxu0 0
    %510 = vmatpush1.bf16.msra.mxu0 0
    %511 = vmatprep.subr.bf16.mxu0 0
    %512 = vmatpush1.bf16.msra.mxu0 0
    %513 = vmatprep.subr.bf16.mxu0 0
    %514 = vmatpush1.bf16.msra.mxu0 0
    %515 = vmatprep.subr.bf16.mxu0 0
    %516 = vmatpush1.bf16.msra.mxu0 0
    %517 = vmatprep.subr.bf16.mxu0 0
    %518 = vmatpush1.bf16.msra.mxu0 0
    %519 = vmatprep.subr.bf16.mxu0 0
    %520 = vmatpush1.bf16.msra.mxu0 0
    %521 = vmatprep.subr.bf16.mxu0 0
    %522 = vmatpush1.bf16.msra.mxu0 0
    %523 = vmatprep.subr.bf16.mxu0 0
    %524 = vmatpush1.bf16.msra.mxu0 0
    %525 = vmatprep.mubr.bf16.mxu0 0
    %526 = vmatmul.mubr.bf16.gmra.mrb[0].mxu0 %v421
    %v527 = vpop.f32.mrb[0].mxu0
    %v528 = vadd.f32 %v443, %v527
    %v529 = vpop.f32.mrb[0].mxu0
    %v530 = vpop.f32.mrb[0].mxu0
    %v531 = vpop.f32.mrb[0].mxu0
    %532 = vdwg.mxu0
    %v533 = vld [vmem:[%s10] sm:$0x1]
    %v534 = vld [vmem:[%s11] sm:$0x1]
    %v535 = vrot.slane %v528, 4
    %v536 = vadd.f32 %v528, %v535
    %v537 = vrot.slane %v536, 2
    %v538 = vadd.f32 %v536, %v537
    %v539 = vrot.slane %v538, 1
    %v540 = vadd.f32 %v538, %v539
    %v541 = vmul.f32 %v540, %v236
    %v542 = vsub.f32 %v528, %v541
    %v543 = vmul.f32 %v542, %v542
    %v544 = vrot.slane %v543, 4
    %v545 = vadd.f32 %v543, %v544
    %v546 = vrot.slane %v545, 2
    %v547 = vadd.f32 %v545, %v546
    %v548 = vrot.slane %v547, 1
    %v549 = vadd.f32 %v547, %v548
    %v550 = vmul.f32 %v549, %v236
    %v551 = vadd.f32 %v550, 1e-05
    %v552 = vrsqrt.pop %v551
    %v553 = vmul.f32 %v542, %v552
    %v555 = vlaneseq
    %v556 = vshrl.u32 %v555, 7
    %v557 = vsub.s32 0, %v556
    %v558 = vrot.slane %v533, %v557
    %v560 = vmul.f32 %v553, %v558
    %v562 = vlaneseq
    %v563 = vshrl.u32 %v562, 7
    %v564 = vsub.s32 0, %v563
    %v565 = vrot.slane %v534, %v564
    %v567 = vadd.f32 %v560, %v565
    %v568 = vmax.f32 %v567, 0.0
    %v569 = vpack.c.bf16 %v568, %v568
    %v570 = vld [vmem:[#allocation10] sm:$0xf]
    %v571 = vld [vmem:[#allocation10 + $0x4] sm:$0xf]
    %v572 = vld [vmem:[#allocation10 + $0x8] sm:$0xf]
    %v573 = vld [vmem:[#allocation10 + $0xc] sm:$0xf]
    %v574 = vld [vmem:[#allocation10 + $0x10] sm:$0xf]
    %v575 = vld [vmem:[#allocation10 + $0x14] sm:$0xf]
    %v576 = vld [vmem:[#allocation10 + $0x18] sm:$0xf]
    %v577 = vld [vmem:[#allocation10 + $0x1c] sm:$0xf]
    %v578 = vld [vmem:[#allocation10 + $0x20] sm:$0xf]
    %v579 = vld [vmem:[#allocation10 + $0x24] sm:$0xf]
    %v580 = vld [vmem:[#allocation10 + $0x28] sm:$0xf]
    %v581 = vld [vmem:[#allocation10 + $0x2c] sm:$0xf]
    %v582 = vld [vmem:[#allocation10 + $0x30] sm:$0xf]
    %v583 = vld [vmem:[#allocation10 + $0x34] sm:$0xf]
    %v584 = vld [vmem:[#allocation10 + $0x38] sm:$0xf]
    %v585 = vld [vmem:[#allocation10 + $0x3c] sm:$0xf]
    %v586 = vld [vmem:[%s13] sm:$0x1]
    %v588 = vlaneseq
    %v589 = vshrl.u32 %v588, 7
    %v590 = vsub.s32 0, %v589
    %v591 = vrot.slane %v586, %v590
    %v609 = vunpack.c.l.b16 %v570
    %v610 = vunpack.c.l.b16 %v571
    %v611 = vunpack.c.l.b16 %v572
    %v612 = vunpack.c.l.b16 %v573
    %v613 = vunpack.c.l.b16 %v574
    %v614 = vunpack.c.l.b16 %v575
    %v615 = vunpack.c.l.b16 %v576
    %v616 = vunpack.c.l.b16 %v577
    %v617 = vunpack.c.l.b16 %v578
    %v618 = vunpack.c.l.b16 %v579
    %v619 = vunpack.c.l.b16 %v580
    %v620 = vunpack.c.l.b16 %v581
    %v621 = vunpack.c.l.b16 %v582
    %v622 = vunpack.c.l.b16 %v583
    %v623 = vunpack.c.l.b16 %v584
    %v624 = vunpack.c.l.b16 %v585
    %v625 = vpack.c.b16 %v610, %v609
    %v626 = vpack.c.b16 %v612, %v611
    %v627 = vpack.c.b16 %v614, %v613
    %v628 = vpack.c.b16 %v616, %v615
    %v629 = vpack.c.b16 %v618, %v617
    %v630 = vpack.c.b16 %v620, %v619
    %v631 = vpack.c.b16 %v622, %v621
    %v632 = vpack.c.b16 %v624, %v623
    %641 = vmatprep.subr.bf16.mxu0 0
    %642 = vmatpush1.bf16.msra.mxu0 %v625
    %643 = vmatprep.subr.bf16.mxu0 0
    %644 = vmatpush1.bf16.msra.mxu0 %v626
    %645 = vmatprep.subr.bf16.mxu0 0
    %646 = vmatpush1.bf16.msra.mxu0 %v627
    %647 = vmatprep.subr.bf16.mxu0 0
    %648 = vmatpush1.bf16.msra.mxu0 %v628
    %649 = vmatprep.subr.bf16.mxu0 0
    %650 = vmatpush1.bf16.msra.mxu0 %v629
    %651 = vmatprep.subr.bf16.mxu0 0
    %652 = vmatpush1.bf16.msra.mxu0 %v630
    %653 = vmatprep.subr.bf16.mxu0 0
    %654 = vmatpush1.bf16.msra.mxu0 %v631
    %655 = vmatprep.subr.bf16.mxu0 0
    %656 = vmatpush1.bf16.msra.mxu0 %v632
    %657 = vmatprep.subr.bf16.mxu0 0
    %658 = vmatpush1.bf16.msra.mxu0 0
    %659 = vmatprep.subr.bf16.mxu0 0
    %660 = vmatpush1.bf16.msra.mxu0 0
    %661 = vmatprep.subr.bf16.mxu0 0
    %662 = vmatpush1.bf16.msra.mxu0 0
    %663 = vmatprep.subr.bf16.mxu0 0
    %664 = vmatpush1.bf16.msra.mxu0 0
    %665 = vmatprep.subr.bf16.mxu0 0
    %666 = vmatpush1.bf16.msra.mxu0 0
    %667 = vmatprep.subr.bf16.mxu0 0
    %668 = vmatpush1.bf16.msra.mxu0 0
    %669 = vmatprep.subr.bf16.mxu0 0
    %670 = vmatpush1.bf16.msra.mxu0 0
    %671 = vmatprep.subr.bf16.mxu0 0
    %672 = vmatpush1.bf16.msra.mxu0 0
    %673 = vmatprep.mubr.bf16.mxu0 0
    %674 = vmatmul.mubr.bf16.gmra.mrb[0].mxu0 %v569
    %v675 = vpop.f32.mrb[0].mxu0
    %v676 = vadd.f32 %v591, %v675
    %v677 = vpop.f32.mrb[0].mxu0
    %v678 = vpop.f32.mrb[0].mxu0
    %v679 = vpop.f32.mrb[0].mxu0
    %680 = vdwg.mxu0
    %v681 = vtanh.pop %v676
    %682 = vst [vmem:[#allocation11] sm:$0xff] %v409
    %683 = vst [vmem:[#allocation11 + $0x8] sm:$0xff] %v411
    %684 = vst [vmem:[#allocation11 + $0x10] sm:$0xff] %v420
    %685 = vst [vmem:[#allocation11 + $0x18] sm:$0xff] %v681
    // Predicated region
    $region78: #{tpu_custom_call.1} parent=1 // pred_check
      _
    $region79: #{tpu_custom_call.1} parent=1 // pred_check_branch
      %687 = sbr.rel (0) target = $region81
    $region80: #{tpu_custom_call.1} parent=1 // pred_region
      %s689 = ssub.s32 512, 512
      %690 = vsyncadd [#allocation4], %s689
      %s692 = sshll.u32 [#allocation11], 4
      %s693 = int_to_ptr.vmem [resolvable:$true] %s692
      %695 = dma.vmem_to_hbm [thread:$0]  %s693, 512, %s14, [#allocation4]
    $region81: #{tpu_custom_call.1} parent=1 // pred_fallthru
      _
    // Predicated region
    $region82: #{tpu_custom_call.1} parent=1 // pred_check
      _
    $region83: #{tpu_custom_call.1} parent=1 // pred_check_branch
      %697 = sbr.rel (0) target = $region85
    $region84: #{tpu_custom_call.1} parent=1 // pred_region
      %698 = dma.done [#allocation4], 512
    $region85: #{tpu_custom_call.1} parent=1 // pred_fallthru
      _
    %699 = vsyncpa [#allocation3], 1
    %700 = vsyncpa [#allocation6], 1
    %701 = vsyncpa [#allocation9], 1
    %702 = vsyncpa [#allocation4], 1

</llo_original>
